<compile_context>
chip_gen: v6e
topology: v6e:2x2x1
jax: 0.10.0
libtpu: 0.0.40
codegen_flags: <defaults>
</compile_context>

<pallas_src>
import functools

import jax
import jax.numpy as jnp
from jax.experimental import pallas as pl
from jax.experimental.pallas import tpu as pltpu

_MiB = 1024 * 1024


def _vmem_budget_and_limit():
    """Generation-aware (per-step working-set budget, scoped VMEM limit)."""
    try:
        cap = int(pltpu.get_tpu_info().vmem_capacity_bytes)
    except Exception:
        cap = 64 * _MiB                      # conservative fallback: assume v7x-sized VMEM
    if cap <= 64 * _MiB:                     # v7x: 64 MiB per TensorCore -> keep ~1/3 headroom
        return 40 * _MiB, 48 * _MiB
    return 56 * _MiB, 72 * _MiB              # v5e / v6e: 128 MiB physical VMEM


# ---------------------------------------------------------------------------
# meta_net: Linear(vis_dim, vis_dim // 16) -> ReLU -> Linear(vis_dim // 16, ctx_dim)
# Computed once for the whole batch (single block, everything resident in VMEM).
# ---------------------------------------------------------------------------
def _meta_net_kernel(im_ref, w1_ref, b1_ref, w2_ref, b2_ref, bias_ref):
    h = jnp.dot(im_ref[...], w1_ref[...], preferred_element_type=jnp.float32) + b1_ref[...]
    h = jnp.maximum(h, 0.0)
    bias = jnp.dot(h, w2_ref[...], preferred_element_type=jnp.float32) + b2_ref[...]
    bias_ref[...] = bias.astype(bias_ref.dtype)


def _meta_net(im_features, w1, b1, w2, b2):
    B, vis_dim = im_features.shape
    hidden = w1.shape[1]
    ctx_dim = w2.shape[1]
    flops = 2 * B * vis_dim * hidden + 2 * B * hidden * ctx_dim
    bytes_accessed = int(im_features.size * im_features.dtype.itemsize
                         + w1.size * w1.dtype.itemsize + b1.size * b1.dtype.itemsize
                         + w2.size * w2.dtype.itemsize + b2.size * b2.dtype.itemsize
                         + B * ctx_dim * 4)
    return pl.pallas_call(
        _meta_net_kernel,
        out_shape=jax.ShapeDtypeStruct((B, ctx_dim), jnp.float32),
        cost_estimate=pl.CostEstimate(flops=flops, transcendentals=0,
                                      bytes_accessed=bytes_accessed),
    )(im_features, w1, b1, w2, b2)


# ---------------------------------------------------------------------------
# Prompt assembly: prompts[b, c, :, :] = cat([prefix_c, ctx + bias_b, suffix_c], token axis)
# ---------------------------------------------------------------------------
def _assemble_kernel(bias_ref, ctx_ref, prefix_ref, suffix_ref, out_ref, *, prompt_mode):
    # Ref shapes (batch dim squeezed away by the BlockSpecs):
    #   bias_ref   : (1, ctx_dim)            instance-conditioned bias for this batch row
    #   ctx_ref    : (n_ctx, ctx_dim)        learned context vectors
    #   prefix_ref : (TC, ctx_dim)           SOS token embedding per class (token axis squeezed)
    #   suffix_ref : (TC, n_suf, ctx_dim)    class-name + EOS token embeddings
    #   out_ref    : (TC, n_tkn, ctx_dim)
    tc, n_tkn, ctx_dim = out_ref.shape
    n_ctx = ctx_ref.shape[0]

    ctx = ctx_ref[...].astype(jnp.float32)
    if prompt_mode == 'cocoop':
        ctx = ctx + bias_ref[...].astype(jnp.float32)      # (1, ctx_dim) broadcasts over n_ctx
    elif prompt_mode == 'zsl':
        pass                                               # plain ctx repeated over the batch
    else:
        raise NotImplementedError(prompt_mode)

    # Three direct sub-slice stores (no materialized concatenate temp -> single store stream;
    # avoids doubling vst traffic on v5e's single vector-store slot).
    out_ref[:, 0:1, :] = prefix_ref[...][:, None, :].astype(out_ref.dtype)
    out_ref[:, 1:1 + n_ctx, :] = jnp.broadcast_to(
        ctx.astype(out_ref.dtype)[None], (tc, n_ctx, ctx_dim))
    out_ref[:, 1 + n_ctx:, :] = suffix_ref[...].astype(out_ref.dtype)


def prompt_learner_cocoop(im_features, w1, b1, w2, b2, ctx, prefix, suffix,
                          *, prompt_mode='cocoop', vmem_budget_bytes=None, out_dtype=None):
    B, vis_dim = im_features.shape
    n_ctx, ctx_dim = ctx.shape
    n_cls = prefix.shape[0]
    n_suf = suffix.shape[1]
    n_tkn = 1 + n_ctx + n_suf
    if out_dtype is None:
        out_dtype = jnp.result_type(ctx.dtype, prefix.dtype, suffix.dtype)
    out_itemsize = jnp.dtype(out_dtype).itemsize

    # 'zsl' output has no batch dependence: assemble once, broadcast over B afterwards.
    bk = B if prompt_mode == 'cocoop' else 1

    if prompt_mode == 'cocoop':
        bias = _meta_net(im_features, w1, b1, w2, b2)                 # (B, ctx_dim) f32
    else:
        bias = jnp.zeros((bk, ctx_dim), jnp.float32)                  # unused in 'zsl'
    bias3 = bias[:, None, :]                                          # (bk, 1, ctx_dim)

    prefix2 = prefix.reshape(n_cls, ctx_dim)                          # squeeze the length-1 token axis

    # --- VMEM budget / class tiling -------------------------------------------------------
    auto_budget, vmem_limit_bytes = _vmem_budget_and_limit()
    if vmem_budget_bytes is None:
        vmem_budget_bytes = auto_budget
    vmem_budget_bytes = min(vmem_budget_bytes, auto_budget)           # never exceed gen-safe budget

    # Per-step double-buffered working set: output + prefix + suffix scale with tc,
    # ctx + bias do not.
    fixed_bytes = 2 * (n_ctx * ctx_dim * ctx.dtype.itemsize + ctx_dim * bias3.dtype.itemsize)
    per_class_bytes = 2 * (n_tkn * ctx_dim * out_itemsize
                           + ctx_dim * prefix2.dtype.itemsize
                           + n_suf * ctx_dim * suffix.dtype.itemsize)
    tc_max = max(1, int((vmem_budget_bytes - fixed_bytes) // per_class_bytes))

    if tc_max >= n_cls:
        tc = n_cls                                                    # whole class axis in one tile
    else:
        tc = max(8, (tc_max // 8) * 8)                                # 8-aligned sublane-facing dim
        n_ct = pl.cdiv(n_cls, tc)
        tc = min(tc, max(8, 8 * pl.cdiv(pl.cdiv(n_cls, n_ct), 8)))    # balance so last tile isn't tiny
    n_ctile = pl.cdiv(n_cls, tc)

    # v7x megacore: if the batch axis is 1, keep >= 2 class tiles so both TensorCores get work
    # (costs nothing on single-core v5e/v6e).
    if bk == 1 and n_ctile == 1 and n_cls >= 16:
        tc = max(8, 8 * pl.cdiv(pl.cdiv(n_cls, 2), 8))
        n_ctile = pl.cdiv(n_cls, tc)

    # --- cost estimate for the reuse-friendly (batch-innermost) DMA pattern ---------------
    flops = bk * n_cls * n_ctx * ctx_dim                              # broadcast adds
    out_bytes = bk * n_cls * n_tkn * ctx_dim * out_itemsize
    in_bytes = int(bk * ctx_dim * bias3.dtype.itemsize                # bias re-read per batch row
                   + ctx.size * ctx.dtype.itemsize                    # ctx/prefix/suffix read once
                   + prefix2.size * prefix2.dtype.itemsize
                   + suffix.size * suffix.dtype.itemsize)

    kernel = functools.partial(_assemble_kernel, prompt_mode=prompt_mode)

    # Grid: class tiles OUTER, batch INNER -> ctx/prefix/suffix block indices are constant
    # across the inner batch loop, so Pallas skips re-DMAing them.
    prompts = pl.pallas_call(
        kernel,
        out_shape=jax.ShapeDtypeStruct((bk, n_cls, n_tkn, ctx_dim), out_dtype),
        grid=(n_ctile, bk),
        in_specs=[
            pl.BlockSpec((pl.Squeezed(), 1, ctx_dim), lambda c, b: (b, 0, 0)),   # bias row
            pl.BlockSpec((n_ctx, ctx_dim), lambda c, b: (0, 0)),                 # ctx parameter
            pl.BlockSpec((tc, ctx_dim), lambda c, b: (c, 0)),                    # token_prefix (squeezed)
            pl.BlockSpec((tc, n_suf, ctx_dim), lambda c, b: (c, 0, 0)),          # token_suffix
        ],
        out_specs=pl.BlockSpec((pl.Squeezed(), tc, n_tkn, ctx_dim),
                               lambda c, b: (b, c, 0, 0)),
        compiler_params=pltpu.CompilerParams(
            dimension_semantics=("parallel", "parallel"),
            vmem_limit_bytes=vmem_limit_bytes),
        cost_estimate=pl.CostEstimate(flops=flops, transcendentals=0,
                                      bytes_accessed=out_bytes + in_bytes),
    )(bias3, ctx, prefix2, suffix)

    if prompt_mode != 'cocoop':
        # Preserves the module's (B, n_cls, n_tkn, ctx_dim) contract.  If the consumer can
        # take the (1, ...) result and broadcast lazily, skip this to avoid B full HBM copies.
        prompts = jnp.broadcast_to(prompts, (B, n_cls, n_tkn, ctx_dim))
    return prompts


if __name__ == "__main__":
    # Small shapes consistent with the module's forward:
    #   n_ctx context tokens, ctx_dim embedding width, vis_dim image-feature width,
    #   total prompt length n_tkn = 1 (prefix) + n_ctx + suffix_len.
    B, vis_dim, ctx_dim, n_ctx, n_cls, n_tkn = 2, 64, 32, 4, 5, 16
    hidden = vis_dim // 16
    n_suf = n_tkn - 1 - n_ctx

    key = jax.random.PRNGKey(0)
    k_im, k_w1, k_b1, k_w2, k_b2, k_ctx, k_pre, k_suf = jax.random.split(key, 8)

    im_features = jax.random.normal(k_im, (B, vis_dim), jnp.float32)
    # meta_net params (deterministic synthetic init)
    w1 = 0.02 * jax.random.normal(k_w1, (vis_dim, hidden), jnp.float32)
    b1 = 0.02 * jax.random.normal(k_b1, (1, hidden), jnp.float32)
    w2 = 0.02 * jax.random.normal(k_w2, (hidden, ctx_dim), jnp.float32)
    b2 = 0.02 * jax.random.normal(k_b2, (1, ctx_dim), jnp.float32)
    # ctx vectors ~ N(0, 0.02) as in nn.init.normal_(ctx_vectors, std=0.02)
    ctx = 0.02 * jax.random.normal(k_ctx, (n_ctx, ctx_dim), jnp.float32)
    # token_prefix / token_suffix stand in for frozen token-embedding buffers
    token_prefix = 0.02 * jax.random.normal(k_pre, (n_cls, 1, ctx_dim), jnp.float32)
    token_suffix = 0.02 * jax.random.normal(k_suf, (n_cls, n_suf, ctx_dim), jnp.float32)

    # --- cocoop mode ---
    prompts = prompt_learner_cocoop(im_features, w1, b1, w2, b2, ctx,
                                    token_prefix, token_suffix, prompt_mode='cocoop')
    jax.block_until_ready(prompts)

    h = jnp.maximum(im_features @ w1 + b1, 0.0)
    bias = h @ w2 + b2                                     # (B, ctx_dim)
    ctx_shifted = ctx[None, :, :] + bias[:, None, :]       # (B, n_ctx, ctx_dim)
    ref = jnp.concatenate([
        jnp.broadcast_to(token_prefix[None], (B, n_cls, 1, ctx_dim)),
        jnp.broadcast_to(ctx_shifted[:, None], (B, n_cls, n_ctx, ctx_dim)),
        jnp.broadcast_to(token_suffix[None], (B, n_cls, n_suf, ctx_dim)),
    ], axis=2)
    assert prompts.shape == (B, n_cls, n_tkn, ctx_dim)
    assert jnp.allclose(prompts, ref, atol=1e-5, rtol=1e-5)

    # --- zsl mode (batch-invariant; assembled once, broadcast in the wrapper) ---
    prompts_zsl = prompt_learner_cocoop(im_features, w1, b1, w2, b2, ctx,
                                        token_prefix, token_suffix, prompt_mode='zsl')
    jax.block_until_ready(prompts_zsl)
    ref_zsl = jnp.concatenate([
        jnp.broadcast_to(token_prefix[None], (B, n_cls, 1, ctx_dim)),
        jnp.broadcast_to(ctx[None, None], (B, n_cls, n_ctx, ctx_dim)),
        jnp.broadcast_to(token_suffix[None], (B, n_cls, n_suf, ctx_dim)),
    ], axis=2)
    assert prompts_zsl.shape == (B, n_cls, n_tkn, ctx_dim)
    assert jnp.allclose(prompts_zsl, ref_zsl, atol=1e-5, rtol=1e-5)

    # --- non-divisible class tiling: tiny budget forces tc=8, n_ctile=3 over n_cls=20 ---
    B2, n_cls2 = 3, 20
    k2 = jax.random.split(jax.random.PRNGKey(1), 3)
    im2 = jax.random.normal(k2[0], (B2, vis_dim), jnp.float32)
    pre2 = 0.02 * jax.random.normal(k2[1], (n_cls2, 1, ctx_dim), jnp.float32)
    suf2 = 0.02 * jax.random.normal(k2[2], (n_cls2, n_suf, ctx_dim), jnp.float32)
    prompts2 = prompt_learner_cocoop(im2, w1, b1, w2, b2, ctx, pre2, suf2,
                                     prompt_mode='cocoop',
                                     vmem_budget_bytes=64 * 1024)
    jax.block_until_ready(prompts2)
    h2 = jnp.maximum(im2 @ w1 + b1, 0.0)
    bias2 = h2 @ w2 + b2
    ctx_shift2 = ctx[None, :, :] + bias2[:, None, :]
    ref2 = jnp.concatenate([
        jnp.broadcast_to(pre2[None], (B2, n_cls2, 1, ctx_dim)),
        jnp.broadcast_to(ctx_shift2[:, None], (B2, n_cls2, n_ctx, ctx_dim)),
        jnp.broadcast_to(suf2[None], (B2, n_cls2, n_suf, ctx_dim)),
    ], axis=2)
    assert prompts2.shape == (B2, n_cls2, n_tkn, ctx_dim)
    assert jnp.allclose(prompts2, ref2, atol=1e-5, rtol=1e-5)

    print("KERNEL_OK")
</pallas_src>

<mosaic_0001>
module attributes {stable_mosaic.version = 11 : i64} {
  func.func @_meta_net_kernel(%arg0: memref<2x64xf32, #tpu.memory_space<vmem>>, %arg1: memref<64x4xf32, #tpu.memory_space<vmem>>, %arg2: memref<1x4xf32, #tpu.memory_space<vmem>>, %arg3: memref<4x32xf32, #tpu.memory_space<vmem>>, %arg4: memref<1x32xf32, #tpu.memory_space<vmem>>, %arg5: memref<2x32xf32, #tpu.memory_space<vmem>>) attributes {dimension_semantics = [], scalar_prefetch = 0 : i64, scratch_operands = 0 : i64, tpu.core_type = #tpu.core_type<tc>} {
    %c0 = arith.constant 0 : index
    %c0_0 = arith.constant 0 : index
    %0 = vector.load %arg0[%c0, %c0_0] : memref<2x64xf32, #tpu.memory_space<vmem>>, vector<2x64xf32>
    %c0_1 = arith.constant 0 : index
    %c0_2 = arith.constant 0 : index
    %1 = vector.load %arg1[%c0_1, %c0_2] : memref<64x4xf32, #tpu.memory_space<vmem>>, vector<64x4xf32>
    %cst = arith.constant dense<0.000000e+00> : vector<2x4xf32>
    %2 = tpu.matmul %0, %1, %cst {dimension_numbers = #tpu.dot_dimension_numbers<[1], [0], [0], [1], [0, 0, 1, 1], [], []>} : vector<2x64xf32>, vector<64x4xf32>, vector<2x4xf32> -> vector<2x4xf32>
    %c0_3 = arith.constant 0 : index
    %c0_4 = arith.constant 0 : index
    %3 = vector.load %arg2[%c0_3, %c0_4] : memref<1x4xf32, #tpu.memory_space<vmem>>, vector<1x4xf32>
    %4 = vector.broadcast %3 : vector<1x4xf32> to vector<2x4xf32>
    %5 = arith.addf %2, %4 : vector<2x4xf32>
    %cst_5 = arith.constant 0.000000e+00 : f32
    %6 = vector.broadcast %cst_5 : f32 to vector<2x4xf32>
    %7 = arith.maximumf %5, %6 : vector<2x4xf32>
    %c0_6 = arith.constant 0 : index
    %c0_7 = arith.constant 0 : index
    %8 = vector.load %arg3[%c0_6, %c0_7] : memref<4x32xf32, #tpu.memory_space<vmem>>, vector<4x32xf32>
    %cst_8 = arith.constant dense<0.000000e+00> : vector<2x32xf32>
    %9 = tpu.matmul %7, %8, %cst_8 {dimension_numbers = #tpu.dot_dimension_numbers<[1], [0], [0], [1], [0, 0, 1, 1], [], []>} : vector<2x4xf32>, vector<4x32xf32>, vector<2x32xf32> -> vector<2x32xf32>
    %c0_9 = arith.constant 0 : index
    %c0_10 = arith.constant 0 : index
    %10 = vector.load %arg4[%c0_9, %c0_10] : memref<1x32xf32, #tpu.memory_space<vmem>>, vector<1x32xf32>
    %11 = vector.broadcast %10 : vector<1x32xf32> to vector<2x32xf32>
    %12 = arith.addf %9, %11 : vector<2x32xf32>
    %c0_11 = arith.constant 0 : index
    %c0_12 = arith.constant 0 : index
    %13 = vector.load %arg5[%c0_11, %c0_12] : memref<2x32xf32, #tpu.memory_space<vmem>>, vector<2x32xf32>
    tpu.vector_store %arg5[%c0_11, %c0_12], %12 {strides = array<i32>} : memref<2x32xf32, #tpu.memory_space<vmem>>, vector<2x32xf32>,
    return
  }
}

</mosaic_0001>

<llo_original>
// kernel: tpu_custom_call.1
$region0: #{tpu_custom_call.1}
  #allocation0 [shape = 'u32[]', space=smem, size = 0x4, offset = 0x4, fixed_abs, tag = 'smem constant byte address 0x4 - core index']
  #allocation1 [shape = 'u32[144,128]{1,0:T(1,128)}', space=vmem, size = 0x12000, scoped, tag = 'internal scratch']
  %s0 = inlined_call_operand.vmem [shape: f32[2,64], index: 0, kind: input, shape index: {}]
  %s1 = inlined_call_operand.vmem [shape: f32[64,4], index: 1, kind: input, shape index: {}]
  %s2 = inlined_call_operand.vmem [shape: f32[1,4], index: 2, kind: input, shape index: {}]
  %s3 = inlined_call_operand.vmem [shape: f32[4,32], index: 3, kind: input, shape index: {}]
  %s4 = inlined_call_operand.vmem [shape: f32[1,32], index: 4, kind: input, shape index: {}]
  %s5 = inlined_call_operand.hbm [shape: f32[2,32], index: 5, kind: output, shape index: {}]
  %s6 = sld [smem:[#allocation0]]
  $region30: #{tpu_custom_call.1} parent=0
    _
  %s8 = ssub.s32 1, %s6
  %s9 = scalar_select 0, %s8, %s6
  $region1: #{tpu_custom_call.1} parent=0
    #allocation2 [shape = 'u8[1024]{0}', space=vmem, size = 0x400, scoped, tag = 'output window, operand 0, single buffered']
    #allocation3 [shape = 's32[1]{0}', space=sflag, size = 0x4, scoped, tag = 'scoped memory for tpu_custom_call.1']
    %10 = vsyncpa [#allocation3], 0
    // Predicated region
    $region2: #{tpu_custom_call.1} parent=1 // pred_check
      _
    $region3: #{tpu_custom_call.1} parent=1 // pred_check_branch
      %12 = sbr.rel (0) target = $region5
    $region4: #{tpu_custom_call.1} parent=1 // pred_region
      _
    $region5: #{tpu_custom_call.1} parent=1 // pred_fallthru
      _
    // Predicated region
    $region6: #{tpu_custom_call.1} parent=1 // pred_check
      _
    $region7: #{tpu_custom_call.1} parent=1 // pred_check_branch
      %14 = sbr.rel (0) target = $region9
    $region8: #{tpu_custom_call.1} parent=1 // pred_region
      _
    $region9: #{tpu_custom_call.1} parent=1 // pred_fallthru
      _
    // Predicated region
    $region10: #{tpu_custom_call.1} parent=1 // pred_check
      _
    $region11: #{tpu_custom_call.1} parent=1 // pred_check_branch
      %16 = sbr.rel (0) target = $region13
    $region12: #{tpu_custom_call.1} parent=1 // pred_region
      _
    $region13: #{tpu_custom_call.1} parent=1 // pred_fallthru
      _
    // Predicated region
    $region14: #{tpu_custom_call.1} parent=1 // pred_check
      _
    $region15: #{tpu_custom_call.1} parent=1 // pred_check_branch
      %18 = sbr.rel (0) target = $region17
    $region16: #{tpu_custom_call.1} parent=1 // pred_region
      _
    $region17: #{tpu_custom_call.1} parent=1 // pred_fallthru
      _
    // Predicated region
    $region18: #{tpu_custom_call.1} parent=1 // pred_check
      _
    $region19: #{tpu_custom_call.1} parent=1 // pred_check_branch
      %20 = sbr.rel (0) target = $region21
    $region20: #{tpu_custom_call.1} parent=1 // pred_region
      _
    $region21: #{tpu_custom_call.1} parent=1 // pred_fallthru
      _
    %v21 = vld [vmem:[%s0] sm:$0x3]
    %v22 = vld [vmem:[%s1] sm:$0xff]
    %v23 = vld [vmem:[%s1 + $0x8] sm:$0xff]
    %v24 = vld [vmem:[%s1 + $0x10] sm:$0xff]
    %v25 = vld [vmem:[%s1 + $0x18] sm:$0xff]
    %v26 = vld [vmem:[%s1 + $0x20] sm:$0xff]
    %v27 = vld [vmem:[%s1 + $0x28] sm:$0xff]
    %v28 = vld [vmem:[%s1 + $0x30] sm:$0xff]
    %v29 = vld [vmem:[%s1 + $0x38] sm:$0xff]
    %v30 = vld [vmem:[%s2] sm:$0x1]
    %v32 = vlaneseq
    %v33 = vshrl.u32 %v32, 7
    %v34 = vsub.s32 0, %v33
    %v35 = vrot.slane %v30, %v34
    %vm37 = vcmask 523264
    %v39 = vsel %vm37, %v21, 0
    %41 = vmatprep.subr.mxu0 0.0
    %42 = vmatpush1.msra.mxu0 0.0
    %43 = vmatprep.subr.mxu0 0.0
    %44 = vmatpush1.msra.mxu0 0.0
    %45 = vmatprep.subr.mxu0 0.0
    %46 = vmatpush1.msra.mxu0 0.0
    %47 = vmatprep.subr.mxu0 0.0
    %48 = vmatpush1.msra.mxu0 0.0
    %49 = vmatprep.subr.mxu0 0.0
    %50 = vmatpush1.msra.mxu0 0.0
    %51 = vmatprep.subr.mxu0 0.0
    %52 = vmatpush1.msra.mxu0 0.0
    %53 = vmatprep.subr.mxu0 0.0
    %54 = vmatpush1.msra.mxu0 0.0
    %55 = vmatprep.subr.mxu0 0.0
    %56 = vmatpush1.msra.mxu0 0.0
    %57 = vmatprep.subr.mxu0 0.0
    %58 = vmatpush1.msra.mxu0 %v29
    %59 = vmatprep.subr.mxu0 0.0
    %60 = vmatpush1.msra.mxu0 %v28
    %61 = vmatprep.subr.mxu0 0.0
    %62 = vmatpush1.msra.mxu0 %v27
    %63 = vmatprep.subr.mxu0 0.0
    %64 = vmatpush1.msra.mxu0 %v26
    %65 = vmatprep.subr.mxu0 0.0
    %66 = vmatpush1.msra.mxu0 %v25
    %67 = vmatprep.subr.mxu0 0.0
    %68 = vmatpush1.msra.mxu0 %v24
    %69 = vmatprep.subr.mxu0 0.0
    %70 = vmatpush1.msra.mxu0 %v23
    %71 = vmatprep.subr.mxu0 0.0
    %72 = vmatpush1.msra.mxu0 %v22
    %73 = vmatprep.subr.mxu0 0.0
    %74 = vmatpush2.msra.mxu0 0.0
    %75 = vmatprep.subr.mxu0 0.0
    %76 = vmatpush2.msra.mxu0 0.0
    %77 = vmatprep.subr.mxu0 0.0
    %78 = vmatpush2.msra.mxu0 0.0
    %79 = vmatprep.subr.mxu0 0.0
    %80 = vmatpush2.msra.mxu0 0.0
    %81 = vmatprep.subr.mxu0 0.0
    %82 = vmatpush2.msra.mxu0 0.0
    %83 = vmatprep.subr.mxu0 0.0
    %84 = vmatpush2.msra.mxu0 0.0
    %85 = vmatprep.subr.mxu0 0.0
    %86 = vmatpush2.msra.mxu0 0.0
    %87 = vmatprep.subr.mxu0 0.0
    %88 = vmatpush2.msra.mxu0 0.0
    %89 = vmatprep.subr.mxu0 0.0
    %90 = vmatpush2.msra.mxu0 0.0
    %91 = vmatprep.subr.mxu0 0.0
    %92 = vmatpush2.msra.mxu0 0.0
    %93 = vmatprep.subr.mxu0 0.0
    %94 = vmatpush2.msra.mxu0 0.0
    %95 = vmatprep.subr.mxu0 0.0
    %96 = vmatpush2.msra.mxu0 0.0
    %97 = vmatprep.subr.mxu0 0.0
    %98 = vmatpush2.msra.mxu0 0.0
    %99 = vmatprep.subr.mxu0 0.0
    %100 = vmatpush2.msra.mxu0 0.0
    %101 = vmatprep.subr.mxu0 0.0
    %102 = vmatpush2.msra.mxu0 0.0
    %103 = vmatprep.subr.mxu0 0.0
    %104 = vmatpush2.msra.mxu0 0.0
    %105 = vmatprep.mubr.f32.mxu0 0.0
    %106 = vmatmul.mubr.f32.gmra.mxu0 %v39
    %v107 = vpop.f32.mrf.mxu0
    %v108 = vadd.f32 %v35, %v107
    %v109 = vpop.f32.mrf.mxu0
    %110 = vdwg.mxu0
    %v111 = vmax.f32 %v108, 0.0
    %v112 = vld [vmem:[%s3] sm:$0xf]
    %v113 = vld [vmem:[%s4] sm:$0x1]
    %v115 = vlaneseq
    %v116 = vshrl.u32 %v115, 7
    %v117 = vsub.s32 0, %v116
    %v118 = vrot.slane %v113, %v117
    %vm120 = vcmask 31744
    %v122 = vsel %vm120, %v111, 0
    %vm124 = vcmask 1043456
    %v126 = vsel %vm124, %v112, 0
    %128 = vmatprep.subr.mxu0 0.0
    %129 = vmatpush1.msra.mxu0 0.0
    %130 = vmatprep.subr.mxu0 0.0
    %131 = vmatpush1.msra.mxu0 0.0
    %132 = vmatprep.subr.mxu0 0.0
    %133 = vmatpush1.msra.mxu0 0.0
    %134 = vmatprep.subr.mxu0 0.0
    %135 = vmatpush1.msra.mxu0 0.0
    %136 = vmatprep.subr.mxu0 0.0
    %137 = vmatpush1.msra.mxu0 0.0
    %138 = vmatprep.subr.mxu0 0.0
    %139 = vmatpush1.msra.mxu0 0.0
    %140 = vmatprep.subr.mxu0 0.0
    %141 = vmatpush1.msra.mxu0 0.0
    %142 = vmatprep.subr.mxu0 0.0
    %143 = vmatpush1.msra.mxu0 0.0
    %144 = vmatprep.subr.mxu0 0.0
    %145 = vmatpush1.msra.mxu0 0.0
    %146 = vmatprep.subr.mxu0 0.0
    %147 = vmatpush1.msra.mxu0 0.0
    %148 = vmatprep.subr.mxu0 0.0
    %149 = vmatpush1.msra.mxu0 0.0
    %150 = vmatprep.subr.mxu0 0.0
    %151 = vmatpush1.msra.mxu0 0.0
    %152 = vmatprep.subr.mxu0 0.0
    %153 = vmatpush1.msra.mxu0 0.0
    %154 = vmatprep.subr.mxu0 0.0
    %155 = vmatpush1.msra.mxu0 0.0
    %156 = vmatprep.subr.mxu0 0.0
    %157 = vmatpush1.msra.mxu0 0.0
    %158 = vmatprep.subr.mxu0 0.0
    %159 = vmatpush1.msra.mxu0 %v126
    %160 = vmatprep.subr.mxu0 0.0
    %161 = vmatpush2.msra.mxu0 0.0
    %162 = vmatprep.subr.mxu0 0.0
    %163 = vmatpush2.msra.mxu0 0.0
    %164 = vmatprep.subr.mxu0 0.0
    %165 = vmatpush2.msra.mxu0 0.0
    %166 = vmatprep.subr.mxu0 0.0
    %167 = vmatpush2.msra.mxu0 0.0
    %168 = vmatprep.subr.mxu0 0.0
    %169 = vmatpush2.msra.mxu0 0.0
    %170 = vmatprep.subr.mxu0 0.0
    %171 = vmatpush2.msra.mxu0 0.0
    %172 = vmatprep.subr.mxu0 0.0
    %173 = vmatpush2.msra.mxu0 0.0
    %174 = vmatprep.subr.mxu0 0.0
    %175 = vmatpush2.msra.mxu0 0.0
    %176 = vmatprep.subr.mxu0 0.0
    %177 = vmatpush2.msra.mxu0 0.0
    %178 = vmatprep.subr.mxu0 0.0
    %179 = vmatpush2.msra.mxu0 0.0
    %180 = vmatprep.subr.mxu0 0.0
    %181 = vmatpush2.msra.mxu0 0.0
    %182 = vmatprep.subr.mxu0 0.0
    %183 = vmatpush2.msra.mxu0 0.0
    %184 = vmatprep.subr.mxu0 0.0
    %185 = vmatpush2.msra.mxu0 0.0
    %186 = vmatprep.subr.mxu0 0.0
    %187 = vmatpush2.msra.mxu0 0.0
    %188 = vmatprep.subr.mxu0 0.0
    %189 = vmatpush2.msra.mxu0 0.0
    %190 = vmatprep.subr.mxu0 0.0
    %191 = vmatpush2.msra.mxu0 0.0
    %192 = vmatprep.mubr.f32.mxu0 0.0
    %193 = vmatmul.mubr.f32.gmra.mxu0 %v122
    %v194 = vpop.f32.mrf.mxu0
    %v195 = vadd.f32 %v118, %v194
    %v196 = vpop.f32.mrf.mxu0
    %197 = vdwg.mxu0
    %vm198 = vcmask 254976
    %199 = vst.msk [vmem:[#allocation2] sm:$0x3] %vm198, %v195
    // Predicated region
    $region22: #{tpu_custom_call.1} parent=1 // pred_check
      _
    $region23: #{tpu_custom_call.1} parent=1 // pred_check_branch
      %201 = sbr.rel (0) target = $region25
    $region24: #{tpu_custom_call.1} parent=1 // pred_region
      %s203 = ssub.s32 32, 32
      %204 = vsyncadd [#allocation3], %s203
      %s206 = sshll.u32 [#allocation2], 4
      %s207 = int_to_ptr.vmem [resolvable:$true] %s206
      %209 = dma.vmem_to_hbm [thread:$0]  %s207, 32, %s5, [#allocation3]
    $region25: #{tpu_custom_call.1} parent=1 // pred_fallthru
      _
    // Predicated region
    $region26: #{tpu_custom_call.1} parent=1 // pred_check
      _
    $region27: #{tpu_custom_call.1} parent=1 // pred_check_branch
      %211 = sbr.rel (0) target = $region29
    $region28: #{tpu_custom_call.1} parent=1 // pred_region
      %212 = dma.done [#allocation3], 32
    $region29: #{tpu_custom_call.1} parent=1 // pred_fallthru
      _
    %213 = vsyncpa [#allocation3], 1

</llo_original>
